<compile_context>
chip_gen: v5e
topology: v5e:2x2
jax: 0.10.0
libtpu: 0.0.40
codegen_flags: <defaults>
</compile_context>

<pallas_src>
import jax
import jax.numpy as jnp
from jax.experimental import pallas as pl
from jax.experimental.pallas import tpu as pltpu


def _round_up(x, m):
    return ((x + m - 1) // m) * m


# ---------------------------------------------------------------------------
# Fast path: small table resident in VMEM, gather as a one-hot matmul (MXU).
# ---------------------------------------------------------------------------
def _vmem_table_kernel(ids_ref, table_ref, out_ref):
    ids = ids_ref[...]                                   # (T, 1) int32
    tokens = ids.shape[0]
    vocab = table_ref.shape[0]
    col = jax.lax.broadcasted_iota(jnp.int32, (tokens, vocab), 1)
    one_hot = (col == ids).astype(table_ref.dtype)       # (T, V), exactly one 1/row
    out_ref[...] = jnp.dot(
        one_hot, table_ref[...], preferred_element_type=jnp.float32
    ).astype(out_ref.dtype)


def _vmem_table_lookup(flat_ids, table, *, token_tile=512):
    (n_tok,) = flat_ids.shape
    V, D = table.shape
    itemsize = jnp.dtype(table.dtype).itemsize

    # Keep (T, V) one-hot intermediate and the double-buffered (T, D) output
    # tile comfortably inside VMEM on every chip generation (incl. v7x).
    t_onehot = max(8, ((2 * 1024 * 1024) // (max(V, 1) * 4)) // 8 * 8)
    t_out = max(8, ((8 * 1024 * 1024) // (2 * D * itemsize)) // 8 * 8)
    T = min(token_tile, t_onehot, t_out, _round_up(n_tok, 8))
    T = max(8, (T // 8) * 8)

    n_pad = _round_up(n_tok, T)
    ids = flat_ids
    if n_pad != n_tok:
        ids = jnp.pad(ids, (0, n_pad - n_tok))
    ids = ids.reshape(n_pad, 1)

    out_flat = pl.pallas_call(
        _vmem_table_kernel,
        out_shape=jax.ShapeDtypeStruct((n_pad, D), table.dtype),
        grid=(n_pad // T,),
        in_specs=[
            pl.BlockSpec((T, 1), lambda i: (i, 0)),          # ids tile (VMEM)
            pl.BlockSpec((V, D), lambda i: (0, 0)),          # whole table, resident
        ],
        out_specs=pl.BlockSpec((T, D), lambda i: (i, 0)),
        compiler_params=pltpu.CompilerParams(
            dimension_semantics=("arbitrary",)),
    )(ids, table)
    return out_flat[:n_tok]


# ---------------------------------------------------------------------------
# Large-table path: table in HBM, per-row gather DMAs into the output tile.
# ---------------------------------------------------------------------------
def _make_gather_kernel(tokens_per_step, queue_depth, unroll):
    T, Q, U = tokens_per_step, queue_depth, unroll

    def kernel(ids_ref, table_hbm, out_ref, sem):
        # ids_ref   : SMEM int32[chunk]  (scalar prefetch, <= 16384 ids/call)
        # table_hbm : HBM  (V, D)        (raw ref, manual row-gather DMAs)
        # out_ref   : VMEM (T, D)        (pipelined output tile)
        # sem       : DMA semaphores (Q,)
        base = pl.program_id(0) * T

        def issue(t, row):
            pltpu.make_async_copy(
                table_hbm.at[pl.ds(row, 1), :],
                out_ref.at[pl.ds(t, 1), :],
                sem.at[t % Q],
            ).start()

        def wait_slot(t):
            # Descriptor only needs size-matched src/dst and the right slot.
            pltpu.make_async_copy(
                table_hbm.at[pl.ds(0, 1), :],
                out_ref.at[pl.ds(0, 1), :],
                sem.at[t % Q],
            ).wait()

        n_prime = min(Q, T)

        # Prime the DMA queue.
        for t in range(n_prime):
            issue(t, ids_ref[base + t])

        # Steady state, unrolled x U.  All scalar id loads of the chunk are
        # hoisted above the first wait: .wait() breaks SMEM sst->sld
        # forwarding, so reading ids after a wait would stall the
        # descriptor-issue path every iteration.
        if T > Q:
            @pl.loop(Q, T, step=U)
            def _(t0):
                rows = [ids_ref[base + t0 + u] for u in range(U)]
                for u in range(U):
                    t = t0 + u
                    wait_slot(t - Q)      # retire oldest in-flight row DMA
                    issue(t, rows[u])     # reuse its semaphore slot

        # Drain: every issued DMA gets exactly one matching wait, so the
        # output tile is complete before the pipeline writes it back to HBM.
        for k in range(n_prime):
            wait_slot(T - n_prime + k)

    return kernel


def _hbm_gather_chunk(flat_ids, table, *, token_tile, queue_depth):
    (n_tok,) = flat_ids.shape
    V, D = table.shape
    itemsize = jnp.dtype(table.dtype).itemsize

    # VMEM-budget-aware token tile: the output tile is double-buffered, so the
    # VMEM cost is 2*T*D*itemsize.  Cap at 16 MiB (safe on v7x's 64 MiB VMEM),
    # keep >= 2 grid steps when possible so both v7x TensorCores issue gathers,
    # and keep T a multiple of 8 sublanes.
    t_budget = max(8, ((16 * 1024 * 1024) // (2 * D * itemsize)) // 8 * 8)
    T = min(token_tile, t_budget, max(8, _round_up((n_tok + 1) // 2, 8)))
    T = max(8, (T // 8) * 8)

    n_pad = _round_up(n_tok, T)
    ids = flat_ids
    if n_pad != n_tok:
        # Padded tail rows gather row 0 and are sliced off afterwards.
        ids = jnp.pad(ids, (0, n_pad - n_tok))

    # Deeper DMA queue (review: 16-32) to cover random-access HBM latency.
    Q = max(8, (min(queue_depth, T) // 8) * 8)
    U = 8                                   # (T - Q) % U == 0 by construction

    kernel = _make_gather_kernel(T, Q, U)
    vmem_limit = int(max(2 * T * D * itemsize + (8 << 20), 32 << 20))

    out_flat = pl.pallas_call(
        kernel,
        out_shape=jax.ShapeDtypeStruct((n_pad, D), table.dtype),
        grid_spec=pltpu.PrefetchScalarGridSpec(
            num_scalar_prefetch=1,                        # ids -> SMEM
            grid=(n_pad // T,),
            in_specs=[pl.BlockSpec(memory_space=pl.ANY)],  # table stays in HBM
            out_specs=pl.BlockSpec((T, D), lambda i, ids: (i, 0)),
            scratch_shapes=[pltpu.SemaphoreType.DMA((Q,))],
        ),
        compiler_params=pltpu.CompilerParams(
            dimension_semantics=("parallel",),            # shards TCs on v7x
            vmem_limit_bytes=vmem_limit,                  # raises v5e default
        ),
    )(ids, table)
    return out_flat[:n_tok]


# Bound the scalar-prefetched id vector (1-D SMEM pads to next_pow2(4N)
# bytes): at most 16384 int32 ids (64 KiB of SMEM) per pallas_call.
_MAX_PREFETCH_TOKENS = 16384


def _hbm_gather_lookup(flat_ids, table, *, token_tile, queue_depth):
    (n_tok,) = flat_ids.shape
    if n_tok <= _MAX_PREFETCH_TOKENS:
        return _hbm_gather_chunk(flat_ids, table,
                                 token_tile=token_tile, queue_depth=queue_depth)
    parts = []
    for s in range(0, n_tok, _MAX_PREFETCH_TOKENS):
        parts.append(_hbm_gather_chunk(
            flat_ids[s:s + _MAX_PREFETCH_TOKENS], table,
            token_tile=token_tile, queue_depth=queue_depth))
    return jnp.concatenate(parts, axis=0)


# ---------------------------------------------------------------------------
# Public lookup + module wrapper.
# ---------------------------------------------------------------------------
_SMALL_TABLE_BYTES = 4 * 1024 * 1024
_SMALL_TABLE_ROWS = 4096


def embedding_lookup(batch_data, embedding_table, *, token_tile=512,
                     queue_depth=32, force_path=None):
    """Pallas equivalent of nn.Embedding(V, D)(batch_data) -> (B, S, D)."""
    B, S = batch_data.shape
    V, D = embedding_table.shape
    itemsize = jnp.dtype(embedding_table.dtype).itemsize

    # PyTorch nn.Embedding raises on out-of-range ids; we clamp instead so the
    # HBM row gather stays in bounds (documented semantic difference).
    flat_ids = jnp.clip(batch_data.reshape(-1).astype(jnp.int32), 0, V - 1)

    use_vmem = (V * D * itemsize <= _SMALL_TABLE_BYTES and V <= _SMALL_TABLE_ROWS)
    if force_path == "vmem":
        use_vmem = True
    elif force_path == "hbm":
        use_vmem = False

    if use_vmem:
        out_flat = _vmem_table_lookup(flat_ids, embedding_table,
                                      token_tile=token_tile)
    else:
        # TODO(synk): huge-vocab tables with D < 128 still pay sub-128B row
        # DMAs and lane-sparse writeback here; a packed multi-row gather
        # (several ids per DMA) would be the next improvement.
        out_flat = _hbm_gather_lookup(flat_ids, embedding_table,
                                      token_tile=token_tile,
                                      queue_depth=queue_depth)
    return out_flat.reshape(B, S, D)


class EmbeddingLayerPallas:
    """Mirror of the PyTorch EmbeddingLayer (forward only)."""

    def __init__(self, embedding_mode, pretrained_word_embeddings, vocab_size):
        # embedding_mode only toggles requires_grad in PyTorch (no fwd effect).
        del embedding_mode, vocab_size
        self.weight = jnp.asarray(pretrained_word_embeddings)
        self.embedding_size = self.weight.shape[-1]

    def __call__(self, batch_data):
        return embedding_lookup(batch_data, self.weight)


if __name__ == "__main__":
    key = jax.random.PRNGKey(0)
    k_w, k_ids, k_w2, k_ids2 = jax.random.split(key, 4)

    # ---- 1) Module-sized demo: small table -> VMEM-resident MXU fast path.
    vocab_size, embedding_size = 50, 32
    B, S = 2, 8
    # bf16-representable values keep the MXU one-hot gather bit-exact
    # regardless of how the compiler decomposes the f32 matmul.
    pretrained_word_embeddings = jax.random.normal(
        k_w, (vocab_size, embedding_size), dtype=jnp.float32
    ).astype(jnp.bfloat16).astype(jnp.float32)
    batch_data = jax.random.randint(k_ids, (B, S), 0, vocab_size, dtype=jnp.int32)

    layer = EmbeddingLayerPallas("static", pretrained_word_embeddings, vocab_size)
    out = jax.block_until_ready(layer(batch_data))
    ref = pretrained_word_embeddings[batch_data]
    assert out.shape == (B, S, embedding_size), out.shape
    assert out.dtype == pretrained_word_embeddings.dtype
    assert jnp.allclose(out, ref, atol=1e-6, rtol=1e-6), "VMEM-path mismatch"

    # ---- 2) Exercise the HBM row-gather path used for large vocabularies.
    V2, D2 = 256, 256
    B2, S2 = 2, 40
    table2 = jax.random.normal(k_w2, (V2, D2), dtype=jnp.float32)
    ids2 = jax.random.randint(k_ids2, (B2, S2), 0, V2, dtype=jnp.int32)
    out2 = jax.block_until_ready(embedding_lookup(ids2, table2, force_path="hbm"))
    ref2 = table2[ids2]
    assert out2.shape == (B2, S2, D2)
    assert jnp.allclose(out2, ref2), "HBM-gather-path mismatch"

    print("KERNEL_OK")
</pallas_src>

<mosaic_0001>
module attributes {stable_mosaic.version = 11 : i64} {
  func.func @_vmem_table_kernel(%arg0: i32, %arg1: memref<16x1xi32, #tpu.memory_space<vmem>>, %arg2: memref<50x32xf32, #tpu.memory_space<vmem>>, %arg3: memref<16x32xf32, #tpu.memory_space<vmem>>) attributes {dimension_semantics = [#tpu.dimension_semantics<arbitrary>], iteration_bounds = array<i64: 1>, scalar_prefetch = 0 : i64, scratch_operands = 0 : i64, tpu.core_type = #tpu.core_type<tc>, window_params = [{transform_indices = @transform_0, window_bounds = array<i64: 16, 1>}, {pipeline_mode = #tpu.pipeline_mode<synchronous>, transform_indices = @transform_1, window_bounds = array<i64: 50, 32>}, {transform_indices = @transform_2, window_bounds = array<i64: 16, 32>}]} {
    %c0 = arith.constant 0 : index
    %c0_0 = arith.constant 0 : index
    %0 = vector.load %arg1[%c0, %c0_0] : memref<16x1xi32, #tpu.memory_space<vmem>>, vector<16x1xi32>
    %1 = tpu.iota {dimensions = array<i32: 1>} : vector<16x50xi32>
    %2 = vector.broadcast %0 : vector<16x1xi32> to vector<16x50xi32>
    %3 = arith.cmpi eq, %1, %2 : vector<16x50xi32>
    %4 = arith.extui %3 : vector<16x50xi1> to vector<16x50xi32>
    %5 = arith.sitofp %4 : vector<16x50xi32> to vector<16x50xf32>
    %c0_1 = arith.constant 0 : index
    %c0_2 = arith.constant 0 : index
    %6 = vector.load %arg2[%c0_1, %c0_2] : memref<50x32xf32, #tpu.memory_space<vmem>>, vector<50x32xf32>
    %cst = arith.constant dense<0.000000e+00> : vector<16x32xf32>
    %7 = tpu.matmul %5, %6, %cst {dimension_numbers = #tpu.dot_dimension_numbers<[1], [0], [0], [1], [0, 0, 1, 1], [], []>} : vector<16x50xf32>, vector<50x32xf32>, vector<16x32xf32> -> vector<16x32xf32>
    %c0_3 = arith.constant 0 : index
    %c0_4 = arith.constant 0 : index
    %8 = vector.load %arg3[%c0_3, %c0_4] : memref<16x32xf32, #tpu.memory_space<vmem>>, vector<16x32xf32>
    tpu.vector_store %arg3[%c0_3, %c0_4], %7 {strides = array<i32>} : memref<16x32xf32, #tpu.memory_space<vmem>>, vector<16x32xf32>,
    return
  }
  func.func @transform_0(%arg0: i32) -> (i32, i32) {
    %c0_i32 = arith.constant 0 : i32
    %c0_i32_0 = arith.constant 0 : i32
    return %arg0, %c0_i32 : i32, i32
  }
  func.func @transform_1(%arg0: i32) -> (i32, i32) {
    %c0_i32 = arith.constant 0 : i32
    %c0_i32_0 = arith.constant 0 : i32
    %c0_i32_1 = arith.constant 0 : i32
    return %c0_i32, %c0_i32_0 : i32, i32
  }
  func.func @transform_2(%arg0: i32) -> (i32, i32) {
    %c0_i32 = arith.constant 0 : i32
    %c0_i32_0 = arith.constant 0 : i32
    return %arg0, %c0_i32 : i32, i32
  }
}

</mosaic_0001>

<llo_original>
// kernel: tpu_custom_call.1
$region0: #{tpu_custom_call.1}
  #allocation0 [shape = 'u32[]', space=smem, size = 0x4, offset = 0x4, fixed_abs, tag = 'smem constant byte address 0x4 - core index']
  #allocation1 [shape = 'u32[72,128]{1,0:T(1,128)}', space=vmem, size = 0x9000, scoped, tag = 'internal scratch']
  %s0 = inlined_call_operand.vmem [shape: s32[16,1], index: 0, kind: input, shape index: {}]
  %s1 = inlined_call_operand.vmem [shape: f32[50,32], index: 1, kind: input, shape index: {}]
  %s2 = inlined_call_operand.hbm [shape: f32[16,32], index: 2, kind: output, shape index: {}]
  %s3 = sld [smem:[#allocation0]]
  $region18: #{tpu_custom_call.1} parent=0
    _
  %s5 = ssub.s32 1, %s3
  %s6 = scalar_select 0, %s5, %s3
  $region1: #{tpu_custom_call.1} parent=0
    #allocation2 [shape = 'u8[8192]{0}', space=vmem, size = 0x2000, scoped, tag = 'output window, operand 0, single buffered']
    #allocation3 [shape = 's32[1]{0}', space=sflag, size = 0x4, scoped, tag = 'scoped memory for tpu_custom_call.1']
    %7 = vsyncpa [#allocation3], 0
    // Predicated region
    $region2: #{tpu_custom_call.1} parent=1 // pred_check
      _
    $region3: #{tpu_custom_call.1} parent=1 // pred_check_branch
      %9 = sbr.rel (0) target = $region5
    $region4: #{tpu_custom_call.1} parent=1 // pred_region
      _
    $region5: #{tpu_custom_call.1} parent=1 // pred_fallthru
      _
    // Predicated region
    $region6: #{tpu_custom_call.1} parent=1 // pred_check
      _
    $region7: #{tpu_custom_call.1} parent=1 // pred_check_branch
      %11 = sbr.rel (0) target = $region9
    $region8: #{tpu_custom_call.1} parent=1 // pred_region
      _
    $region9: #{tpu_custom_call.1} parent=1 // pred_fallthru
      _
    %v12 = vld [vmem:[%s0] sm:$0xff]
    %v13 = vld [vmem:[%s0 + $0x8] sm:$0xff]
    %v14 = vlaneseq
    %v15 = vand.u32 %v14, 127
    %16 = vset.pattern.permute.xlu0 0
    %17 = vperm.xlu0 %16, %v12
    %v18 = vpop.permute.xlu0 %17
    %19 = vset.pattern.permute.xlu0 0
    %20 = vperm.xlu0 %19, %v13
    %v21 = vpop.permute.xlu0 %20
    %vm22 = vcmp.eq.s32.totalorder %v15, %v18
    %vm23 = vcmp.eq.s32.totalorder %v15, %v21
    %v24 = vsel %vm22, 1, 0
    %v25 = vsel %vm23, 1, 0
    %v26 = vcvt.s32.f32 %v24
    %v27 = vcvt.s32.f32 %v25
    %v28 = vld [vmem:[%s1] sm:$0xff]
    %v29 = vld [vmem:[%s1 + $0x8] sm:$0xff]
    %v30 = vld [vmem:[%s1 + $0x10] sm:$0xff]
    %v31 = vld [vmem:[%s1 + $0x18] sm:$0xff]
    %v32 = vld [vmem:[%s1 + $0x20] sm:$0xff]
    %v33 = vld [vmem:[%s1 + $0x28] sm:$0xff]
    %v34 = vld [vmem:[%s1 + $0x30] sm:$0x3]
    %vm35 = vcmask 408576
    %v37 = vsel %vm35, %v26, 0
    %v40 = vsel %vm35, %v27, 0
    %vm42 = vcmask 1041408
    %v44 = vsel %vm42, %v34, 0
    %46 = vmatpush.msra.mxu0 0.0
    %47 = vmatpush.msra.mxu0 0.0
    %48 = vmatpush.msra.mxu0 0.0
    %49 = vmatpush.msra.mxu0 0.0
    %50 = vmatpush.msra.mxu0 0.0
    %51 = vmatpush.msra.mxu0 0.0
    %52 = vmatpush.msra.mxu0 0.0
    %53 = vmatpush.msra.mxu0 0.0
    %54 = vmatpush.msra.mxu0 0.0
    %55 = vmatpush.msra.mxu0 %v44
    %56 = vmatpush.msra.mxu0 %v33
    %57 = vmatpush.msra.mxu0 %v32
    %58 = vmatpush.msra.mxu0 %v31
    %59 = vmatpush.msra.mxu0 %v30
    %60 = vmatpush.msra.mxu0 %v29
    %61 = vmatpush.msra.mxu0 %v28
    %62 = vmatmul.f32.gmra.mxu0 %v37
    %v63 = vpop.f32.mrf.mxu0
    %v64 = vadd.f32 0.0, %v63
    %65 = vmatmul.f32.gmra.mxu0 %v40
    %v66 = vpop.f32.mrf.mxu0
    %v67 = vadd.f32 0.0, %v66
    %68 = vdwg.mxu0
    %vm69 = vcmask 261120
    %70 = vst.msk [vmem:[#allocation2] sm:$0xff] %vm69, %v64
    %71 = vst.msk [vmem:[#allocation2 + $0x8] sm:$0xff] %vm69, %v67
    // Predicated region
    $region10: #{tpu_custom_call.1} parent=1 // pred_check
      _
    $region11: #{tpu_custom_call.1} parent=1 // pred_check_branch
      %73 = sbr.rel (0) target = $region13
    $region12: #{tpu_custom_call.1} parent=1 // pred_region
      %75 = vsyncadd [#allocation3], 0
      %s76 = sshll.u32 [#allocation2], 4
      %s77 = int_to_ptr.vmem [resolvable:$true] %s76
      %s78 = sshll.u32 %s2, 4
      %s79 = int_to_ptr.hbm [resolvable:$true] %s78
      %84 = dma.vmem_to_hbm [thread:$0]  %s77, 256, %s79, [#allocation3], 128, 128, 8
    $region13: #{tpu_custom_call.1} parent=1 // pred_fallthru
      _
    // Predicated region
    $region14: #{tpu_custom_call.1} parent=1 // pred_check
      _
    $region15: #{tpu_custom_call.1} parent=1 // pred_check_branch
      %86 = sbr.rel (0) target = $region17
    $region16: #{tpu_custom_call.1} parent=1 // pred_region
      %88 = dma.done [#allocation3], 256
    $region17: #{tpu_custom_call.1} parent=1 // pred_fallthru
      _
    %89 = vsyncpa [#allocation3], 1

</llo_original>
